<compile_context>
chip_gen: v5e
topology: v5e:2x2
jax: 0.10.0
libtpu: 0.0.40
codegen_flags: <defaults>
</compile_context>

<pallas_src>
import jax
import jax.numpy as jnp
from jax.experimental import pallas as pl
from jax.experimental.pallas import tpu as pltpu


def _sparse_mlp_kernel(x_ref,
                       w1_ref, b1_ref,
                       w2_ref, b2_ref,
                       w3_ref, b3_ref,
                       o_ref):
    """Fused forward for one batch tile.  Weights arrive pre-masked (w*m).

    sl1: SimpleSparseLayer        (in  -> hidden)
    sl2: NearestNeighborSparse    (hid -> hidden)
    sl3: SelfConnectedSparse      (hid -> hidden)   -- applied twice (see forward)
    """
    x = x_ref[...]

    h1 = jnp.dot(x, w1_ref[...], preferred_element_type=jnp.float32) + b1_ref[...]
    h2 = jnp.dot(h1, w2_ref[...], preferred_element_type=jnp.float32) + b2_ref[...]

    w3 = w3_ref[...]
    b3 = b3_ref[...]
    h3 = jnp.dot(h2, w3, preferred_element_type=jnp.float32) + b3
    # forward() does sl4_out = self.sl3(sl3_out): sl3 applied a second time.
    h4 = jnp.dot(h3, w3, preferred_element_type=jnp.float32) + b3

    o_ref[...] = h4.astype(o_ref.dtype)


def sparse_model_forward(x_nchw, params, *, tm=8):
    """x_nchw: [B, C, H, W] float32.  Returns [B, hidden_features] float32."""
    b = x_nchw.shape[0]
    x = x_nchw.reshape(b, -1)                       # nn.Flatten()
    in_features = x.shape[1]
    hidden = params["w1"].shape[1]

    # Fold the static masks into the weights outside the kernel: halves weight
    # DMA and removes all in-kernel VPU mask work (masks never change per call).
    w1m = params["w1"] * params["m1"]
    w2m = params["w2"] * params["m2"]
    w3m = params["w3"] * params["m3"]

    # Pad batch up to a multiple of the batch tile so sublanes are full and the
    # grid divides exactly; padded rows are discarded after the call.
    bp = ((b + tm - 1) // tm) * tm
    if bp != b:
        x = jnp.pad(x, ((0, bp - b), (0, 0)))

    grid = (bp // tm,)

    out = pl.pallas_call(
        _sparse_mlp_kernel,
        out_shape=jax.ShapeDtypeStruct((bp, hidden), jnp.float32),
        grid_spec=pltpu.PrefetchScalarGridSpec(
            num_scalar_prefetch=0,
            grid=grid,
            in_specs=[
                pl.BlockSpec((tm, in_features), lambda i: (i, 0)),   # x tile
                pl.BlockSpec((in_features, hidden), lambda i: (0, 0)),  # w1*m1
                pl.BlockSpec((1, hidden), lambda i: (0, 0)),            # b1
                pl.BlockSpec((hidden, hidden), lambda i: (0, 0)),       # w2*m2
                pl.BlockSpec((1, hidden), lambda i: (0, 0)),            # b2
                pl.BlockSpec((hidden, hidden), lambda i: (0, 0)),       # w3*m3
                pl.BlockSpec((1, hidden), lambda i: (0, 0)),            # b3
            ],
            out_specs=pl.BlockSpec((tm, hidden), lambda i: (i, 0)),
        ),
        compiler_params=pltpu.CompilerParams(
            dimension_semantics=("parallel",),   # shard batch tiles across TCs (v7x)
        ),
    )(x, w1m, params["b1"], w2m, params["b2"], w3m, params["b3"])

    return out[:b]


def init_params(key, in_features, hidden_features, out_features):
    """Deterministic parameter/mask init (PyTorch-Linear-style uniform bounds)."""
    keys = jax.random.split(key, 12)

    def linear(kw, kb, fan_in, fan_out):
        bound = 1.0 / jnp.sqrt(fan_in)
        w = jax.random.uniform(kw, (fan_in, fan_out), jnp.float32, -bound, bound)
        bias = jax.random.uniform(kb, (1, fan_out), jnp.float32, -bound, bound)
        return w, bias

    # sl1: SimpleSparseLayer(in, hidden) — random 50% mask
    w1, b1 = linear(keys[0], keys[1], in_features, hidden_features)
    m1 = jax.random.bernoulli(keys[2], 0.5, (in_features, hidden_features)).astype(jnp.float32)

    # sl2: NearestNeighborSparseLayer(hidden, hidden) — banded mask, ~50% density
    w2, b2 = linear(keys[3], keys[4], hidden_features, hidden_features)
    bw = max(0, (hidden_features // 2 - 1) // 2)
    ii = jnp.arange(hidden_features)[:, None]
    jj = jnp.arange(hidden_features)[None, :]
    m2 = (jnp.abs(ii - jj) <= bw).astype(jnp.float32)

    # sl3: SelfConnectedSparseLayer(hidden, hidden) — diagonal + random, ~50%
    w3, b3 = linear(keys[5], keys[6], hidden_features, hidden_features)
    rand3 = jax.random.bernoulli(keys[7], 0.5, (hidden_features, hidden_features))
    m3 = jnp.maximum(jnp.eye(hidden_features, dtype=jnp.float32), rand3.astype(jnp.float32))

    # sl4 exists in __init__ but is never used in forward(); initialized for fidelity only.
    w4, b4 = linear(keys[8], keys[9], hidden_features, out_features)
    m4 = jax.random.bernoulli(keys[10], 0.5, (hidden_features, out_features)).astype(jnp.float32)

    return {"w1": w1, "m1": m1, "b1": b1,
            "w2": w2, "m2": m2, "b2": b2,
            "w3": w3, "m3": m3, "b3": b3,
            "w4": w4, "m4": m4, "b4": b4}


def reference_forward(x_nchw, p):
    x = x_nchw.reshape(x_nchw.shape[0], -1)
    h1 = x @ (p["w1"] * p["m1"]) + p["b1"]
    h2 = h1 @ (p["w2"] * p["m2"]) + p["b2"]
    h3 = h2 @ (p["w3"] * p["m3"]) + p["b3"]
    h4 = h3 @ (p["w3"] * p["m3"]) + p["b3"]
    return h4


if __name__ == "__main__":
    # Shapes consistent with the module: channels=4, spatial=16x16
    # -> in_features = 4*16*16 = 1024, hidden_features = 32, out_features = 16.
    # Batch = 8 so f32 activation vregs fill all 8 sublanes (perf review item).
    B, C, Hs, Ws = 8, 4, 16, 16
    in_features = C * Hs * Ws
    hidden_features = 32
    out_features = 16

    key = jax.random.PRNGKey(0)
    k_x, k_p = jax.random.split(key)
    x = jax.random.normal(k_x, (B, C, Hs, Ws), dtype=jnp.float32)
    params = init_params(k_p, in_features, hidden_features, out_features)

    fwd = jax.jit(sparse_model_forward)
    out = fwd(x, params)
    out = jax.block_until_ready(out)

    ref = reference_forward(x, params)
    assert out.shape == (B, hidden_features), out.shape
    assert jnp.allclose(out, ref, atol=1e-4, rtol=1e-4), float(jnp.max(jnp.abs(out - ref)))

    print("KERNEL_OK")
</pallas_src>

<mosaic_0001>
module attributes {stable_mosaic.version = 11 : i64} {
  func.func @_sparse_mlp_kernel(%arg0: i32, %arg1: memref<8x1024xf32, #tpu.memory_space<vmem>>, %arg2: memref<1024x32xf32, #tpu.memory_space<vmem>>, %arg3: memref<1x32xf32, #tpu.memory_space<vmem>>, %arg4: memref<32x32xf32, #tpu.memory_space<vmem>>, %arg5: memref<1x32xf32, #tpu.memory_space<vmem>>, %arg6: memref<32x32xf32, #tpu.memory_space<vmem>>, %arg7: memref<1x32xf32, #tpu.memory_space<vmem>>, %arg8: memref<8x32xf32, #tpu.memory_space<vmem>>) attributes {dimension_semantics = [#tpu.dimension_semantics<parallel>], iteration_bounds = array<i64: 1>, scalar_prefetch = 0 : i64, scratch_operands = 0 : i64, tpu.core_type = #tpu.core_type<tc>, window_params = [{transform_indices = @transform_0, window_bounds = array<i64: 8, 1024>}, {pipeline_mode = #tpu.pipeline_mode<synchronous>, transform_indices = @transform_1, window_bounds = array<i64: 1024, 32>}, {pipeline_mode = #tpu.pipeline_mode<synchronous>, transform_indices = @transform_2, window_bounds = array<i64: 1, 32>}, {pipeline_mode = #tpu.pipeline_mode<synchronous>, transform_indices = @transform_3, window_bounds = array<i64: 32, 32>}, {pipeline_mode = #tpu.pipeline_mode<synchronous>, transform_indices = @transform_4, window_bounds = array<i64: 1, 32>}, {pipeline_mode = #tpu.pipeline_mode<synchronous>, transform_indices = @transform_5, window_bounds = array<i64: 32, 32>}, {pipeline_mode = #tpu.pipeline_mode<synchronous>, transform_indices = @transform_6, window_bounds = array<i64: 1, 32>}, {transform_indices = @transform_7, window_bounds = array<i64: 8, 32>}]} {
    %c0 = arith.constant 0 : index
    %c0_0 = arith.constant 0 : index
    %0 = vector.load %arg1[%c0, %c0_0] : memref<8x1024xf32, #tpu.memory_space<vmem>>, vector<8x1024xf32>
    %c0_1 = arith.constant 0 : index
    %c0_2 = arith.constant 0 : index
    %1 = vector.load %arg2[%c0_1, %c0_2] : memref<1024x32xf32, #tpu.memory_space<vmem>>, vector<1024x32xf32>
    %cst = arith.constant dense<0.000000e+00> : vector<8x32xf32>
    %2 = tpu.matmul %0, %1, %cst {dimension_numbers = #tpu.dot_dimension_numbers<[1], [0], [0], [1], [0, 0, 1, 1], [], []>} : vector<8x1024xf32>, vector<1024x32xf32>, vector<8x32xf32> -> vector<8x32xf32>
    %c0_3 = arith.constant 0 : index
    %c0_4 = arith.constant 0 : index
    %3 = vector.load %arg3[%c0_3, %c0_4] : memref<1x32xf32, #tpu.memory_space<vmem>>, vector<1x32xf32>
    %4 = vector.broadcast %3 : vector<1x32xf32> to vector<8x32xf32>
    %5 = arith.addf %2, %4 : vector<8x32xf32>
    %c0_5 = arith.constant 0 : index
    %c0_6 = arith.constant 0 : index
    %6 = vector.load %arg4[%c0_5, %c0_6] : memref<32x32xf32, #tpu.memory_space<vmem>>, vector<32x32xf32>
    %cst_7 = arith.constant dense<0.000000e+00> : vector<8x32xf32>
    %7 = tpu.matmul %5, %6, %cst_7 {dimension_numbers = #tpu.dot_dimension_numbers<[1], [0], [0], [1], [0, 0, 1, 1], [], []>} : vector<8x32xf32>, vector<32x32xf32>, vector<8x32xf32> -> vector<8x32xf32>
    %c0_8 = arith.constant 0 : index
    %c0_9 = arith.constant 0 : index
    %8 = vector.load %arg5[%c0_8, %c0_9] : memref<1x32xf32, #tpu.memory_space<vmem>>, vector<1x32xf32>
    %9 = vector.broadcast %8 : vector<1x32xf32> to vector<8x32xf32>
    %10 = arith.addf %7, %9 : vector<8x32xf32>
    %c0_10 = arith.constant 0 : index
    %c0_11 = arith.constant 0 : index
    %11 = vector.load %arg6[%c0_10, %c0_11] : memref<32x32xf32, #tpu.memory_space<vmem>>, vector<32x32xf32>
    %c0_12 = arith.constant 0 : index
    %c0_13 = arith.constant 0 : index
    %12 = vector.load %arg7[%c0_12, %c0_13] : memref<1x32xf32, #tpu.memory_space<vmem>>, vector<1x32xf32>
    %cst_14 = arith.constant dense<0.000000e+00> : vector<8x32xf32>
    %13 = tpu.matmul %10, %11, %cst_14 {dimension_numbers = #tpu.dot_dimension_numbers<[1], [0], [0], [1], [0, 0, 1, 1], [], []>} : vector<8x32xf32>, vector<32x32xf32>, vector<8x32xf32> -> vector<8x32xf32>
    %14 = vector.broadcast %12 : vector<1x32xf32> to vector<8x32xf32>
    %15 = arith.addf %13, %14 : vector<8x32xf32>
    %cst_15 = arith.constant dense<0.000000e+00> : vector<8x32xf32>
    %16 = tpu.matmul %15, %11, %cst_15 {dimension_numbers = #tpu.dot_dimension_numbers<[1], [0], [0], [1], [0, 0, 1, 1], [], []>} : vector<8x32xf32>, vector<32x32xf32>, vector<8x32xf32> -> vector<8x32xf32>
    %17 = vector.broadcast %12 : vector<1x32xf32> to vector<8x32xf32>
    %18 = arith.addf %16, %17 : vector<8x32xf32>
    %c0_16 = arith.constant 0 : index
    %c0_17 = arith.constant 0 : index
    %19 = vector.load %arg8[%c0_16, %c0_17] : memref<8x32xf32, #tpu.memory_space<vmem>>, vector<8x32xf32>
    tpu.vector_store %arg8[%c0_16, %c0_17], %18 {strides = array<i32>} : memref<8x32xf32, #tpu.memory_space<vmem>>, vector<8x32xf32>,
    return
  }
  func.func @transform_0(%arg0: i32) -> (i32, i32) {
    %c0_i32 = arith.constant 0 : i32
    %c0_i32_0 = arith.constant 0 : i32
    return %arg0, %c0_i32 : i32, i32
  }
  func.func @transform_1(%arg0: i32) -> (i32, i32) {
    %c0_i32 = arith.constant 0 : i32
    %c0_i32_0 = arith.constant 0 : i32
    %c0_i32_1 = arith.constant 0 : i32
    return %c0_i32, %c0_i32_0 : i32, i32
  }
  func.func @transform_2(%arg0: i32) -> (i32, i32) {
    %c0_i32 = arith.constant 0 : i32
    %c0_i32_0 = arith.constant 0 : i32
    %c0_i32_1 = arith.constant 0 : i32
    return %c0_i32, %c0_i32_0 : i32, i32
  }
  func.func @transform_3(%arg0: i32) -> (i32, i32) {
    %c0_i32 = arith.constant 0 : i32
    %c0_i32_0 = arith.constant 0 : i32
    %c0_i32_1 = arith.constant 0 : i32
    return %c0_i32, %c0_i32_0 : i32, i32
  }
  func.func @transform_4(%arg0: i32) -> (i32, i32) {
    %c0_i32 = arith.constant 0 : i32
    %c0_i32_0 = arith.constant 0 : i32
    %c0_i32_1 = arith.constant 0 : i32
    return %c0_i32, %c0_i32_0 : i32, i32
  }
  func.func @transform_5(%arg0: i32) -> (i32, i32) {
    %c0_i32 = arith.constant 0 : i32
    %c0_i32_0 = arith.constant 0 : i32
    %c0_i32_1 = arith.constant 0 : i32
    return %c0_i32, %c0_i32_0 : i32, i32
  }
  func.func @transform_6(%arg0: i32) -> (i32, i32) {
    %c0_i32 = arith.constant 0 : i32
    %c0_i32_0 = arith.constant 0 : i32
    %c0_i32_1 = arith.constant 0 : i32
    return %c0_i32, %c0_i32_0 : i32, i32
  }
  func.func @transform_7(%arg0: i32) -> (i32, i32) {
    %c0_i32 = arith.constant 0 : i32
    %c0_i32_0 = arith.constant 0 : i32
    return %arg0, %c0_i32 : i32, i32
  }
}

</mosaic_0001>

<llo_original>
// kernel: mul.3
$region0: #{mul.3}
  #allocation4 [shape = 's32[1]{0}', space=sflag, size = 0x4, scoped, tag = 'scoped memory for mul.3']
  %s0 = inlined_call_operand.hbm [shape: f32[1024,32], index: 0, kind: input, shape index: {}]
  %s1 = inlined_call_operand.hbm [shape: f32[1024,32], index: 1, kind: input, shape index: {}]
  %s2 = inlined_call_operand.vmem [shape: f32[1024,32], index: 2, kind: output, shape index: {}]
  $region1: #{mul.3} parent=0
    #allocation0 [shape = 'u8[131072]{0}', space=vmem, size = 0x20000, scoped, tag = 'operand span for operand 0']
    #allocation1 [shape = 's32[1]{0}', space=sflag, size = 0x4, scoped, tag = 'scoped memory for mul.3']
    #allocation2 [shape = 'u8[131072]{0}', space=vmem, size = 0x20000, scoped, tag = 'operand span for operand 1']
    #allocation3 [shape = 's32[1]{0}', space=sflag, size = 0x4, scoped, tag = 'scoped memory for mul.3']
    %3 = vsyncpa [#allocation1], 0
    %4 = vsyncpa [#allocation3], 0
    %6 = vsyncadd [#allocation1], 0
    %s7 = sshll.u32 %s0, 4
    %s8 = int_to_ptr.hbm [resolvable:$true] %s7
    %s9 = sshll.u32 [#allocation0], 4
    %s10 = int_to_ptr.vmem [resolvable:$true] %s9
    %15 = dma.hbm_to_vmem [thread:$0]  %s8, 4096, %s10, [#allocation1], 1024, 1024, 64
    %17 = vsyncadd [#allocation3], 0
    %s18 = sshll.u32 %s1, 4
    %s19 = int_to_ptr.hbm [resolvable:$true] %s18
    %s20 = sshll.u32 [#allocation2], 4
    %s21 = int_to_ptr.vmem [resolvable:$true] %s20
    %26 = dma.hbm_to_vmem [thread:$0]  %s19, 4096, %s21, [#allocation3], 1024, 1024, 64
    %28 = dma.done [#allocation1], 4096
    %30 = dma.done [#allocation3], 4096
    %v31 = vld [vmem:[#allocation0] sm:$0xff]
    %v32 = vld [vmem:[#allocation2] sm:$0xff]
    %33 = xla_tuple %v31, %v32
    %34 = xla_tuple %33
    %v35 = vmul.f32 %v31, %v32
    %36 = xla_tuple %v35
    %37 = vst [vmem:[%s2] sm:$0xff] %v35
    %s38 = scalar_lea.vmem [#allocation0], 64
    %v39 = vld [vmem:[%s38] sm:$0xff]
    %s40 = scalar_lea.vmem [#allocation2], 64
    %v41 = vld [vmem:[%s40] sm:$0xff]
    %42 = xla_tuple %v39, %v41
    %43 = xla_tuple %42
    %v44 = vmul.f32 %v39, %v41
    %45 = xla_tuple %v44
    %s46 = scalar_lea.vmem %s2, 64
    %47 = vst [vmem:[%s46] sm:$0xff] %v44
    %s48 = scalar_lea.vmem [#allocation0], 128
    %v49 = vld [vmem:[%s48] sm:$0xff]
    %s50 = scalar_lea.vmem [#allocation2], 128
    %v51 = vld [vmem:[%s50] sm:$0xff]
    %52 = xla_tuple %v49, %v51
    %53 = xla_tuple %52
    %v54 = vmul.f32 %v49, %v51
    %55 = xla_tuple %v54
    %s56 = scalar_lea.vmem %s2, 128
    %57 = vst [vmem:[%s56] sm:$0xff] %v54
    %s58 = scalar_lea.vmem [#allocation0], 192
    %v59 = vld [vmem:[%s58] sm:$0xff]
    %s60 = scalar_lea.vmem [#allocation2], 192
    %v61 = vld [vmem:[%s60] sm:$0xff]
    %62 = xla_tuple %v59, %v61
    %63 = xla_tuple %62
    %v64 = vmul.f32 %v59, %v61
    %65 = xla_tuple %v64
    %s66 = scalar_lea.vmem %s2, 192
    %67 = vst [vmem:[%s66] sm:$0xff] %v64
    %s68 = scalar_lea.vmem [#allocation0], 8
    %v69 = vld [vmem:[%s68] sm:$0xff]
    %s70 = scalar_lea.vmem [#allocation2], 8
    %v71 = vld [vmem:[%s70] sm:$0xff]
    %72 = xla_tuple %v69, %v71
    %73 = xla_tuple %72
    %v74 = vmul.f32 %v69, %v71
    %75 = xla_tuple %v74
    %s76 = scalar_lea.vmem %s2, 8
    %77 = vst [vmem:[%s76] sm:$0xff] %v74
    %s78 = scalar_lea.vmem [#allocation0], 72
    %v79 = vld [vmem:[%s78] sm:$0xff]
    %s80 = scalar_lea.vmem [#allocation2], 72
    %v81 = vld [vmem:[%s80] sm:$0xff]
    %82 = xla_tuple %v79, %v81
    %83 = xla_tuple %82
    %v84 = vmul.f32 %v79, %v81
    %85 = xla_tuple %v84
    %s86 = scalar_lea.vmem %s2, 72
    %87 = vst [vmem:[%s86] sm:$0xff] %v84
    %s88 = scalar_lea.vmem [#allocation0], 136
    %v89 = vld [vmem:[%s88] sm:$0xff]
    %s90 = scalar_lea.vmem [#allocation2], 136
    %v91 = vld [vmem:[%s90] sm:$0xff]
    %92 = xla_tuple %v89, %v91
    %93 = xla_tuple %92
    %v94 = vmul.f32 %v89, %v91
    %95 = xla_tuple %v94
    %s96 = scalar_lea.vmem %s2, 136
    %97 = vst [vmem:[%s96] sm:$0xff] %v94
    %s98 = scalar_lea.vmem [#allocation0], 200
    %v99 = vld [vmem:[%s98] sm:$0xff]
    %s100 = scalar_lea.vmem [#allocation2], 200
    %v101 = vld [vmem:[%s100] sm:$0xff]
    %102 = xla_tuple %v99, %v101
    %103 = xla_tuple %102
    %v104 = vmul.f32 %v99, %v101
    %105 = xla_tuple %v104
    %s106 = scalar_lea.vmem %s2, 200
    %107 = vst [vmem:[%s106] sm:$0xff] %v104
    %s108 = scalar_lea.vmem [#allocation0], 16
    %v109 = vld [vmem:[%s108] sm:$0xff]
    %s110 = scalar_lea.vmem [#allocation2], 16
    %v111 = vld [vmem:[%s110] sm:$0xff]
    %112 = xla_tuple %v109, %v111
    %113 = xla_tuple %112
    %v114 = vmul.f32 %v109, %v111
    %115 = xla_tuple %v114
    %s116 = scalar_lea.vmem %s2, 16
    %117 = vst [vmem:[%s116] sm:$0xff] %v114
    %s118 = scalar_lea.vmem [#allocation0], 80
    %v119 = vld [vmem:[%s118] sm:$0xff]
    %s120 = scalar_lea.vmem [#allocation2], 80
    %v121 = vld [vmem:[%s120] sm:$0xff]
    %122 = xla_tuple %v119, %v121
    %123 = xla_tuple %122
    %v124 = vmul.f32 %v119, %v121
    %125 = xla_tuple %v124
    %s126 = scalar_lea.vmem %s2, 80
    %127 = vst [vmem:[%s126] sm:$0xff] %v124
    %s128 = scalar_lea.vmem [#allocation0], 144
    %v129 = vld [vmem:[%s128] sm:$0xff]
    %s130 = scalar_lea.vmem [#allocation2], 144
    %v131 = vld [vmem:[%s130] sm:$0xff]
    %132 = xla_tuple %v129, %v131
    %133 = xla_tuple %132
    %v134 = vmul.f32 %v129, %v131
    %135 = xla_tuple %v134
    %s136 = scalar_lea.vmem %s2, 144
    %137 = vst [vmem:[%s136] sm:$0xff] %v134
    %s138 = scalar_lea.vmem [#allocation0], 208
    %v139 = vld [vmem:[%s138] sm:$0xff]
    %s140 = scalar_lea.vmem [#allocation2], 208
    %v141 = vld [vmem:[%s140] sm:$0xff]
    %142 = xla_tuple %v139, %v141
    %143 = xla_tuple %142
    %v144 = vmul.f32 %v139, %v141
    %145 = xla_tuple %v144
    %s146 = scalar_lea.vmem %s2, 208
    %147 = vst [vmem:[%s146] sm:$0xff] %v144
    %s148 = scalar_lea.vmem [#allocation0], 24
    %v149 = vld [vmem:[%s148] sm:$0xff]
    %s150 = scalar_lea.vmem [#allocation2], 24
    %v151 = vld [vmem:[%s150] sm:$0xff]
    %152 = xla_tuple %v149, %v151
    %153 = xla_tuple %152
    %v154 = vmul.f32 %v149, %v151
    %155 = xla_tuple %v154
    %s156 = scalar_lea.vmem %s2, 24
    %157 = vst [vmem:[%s156] sm:$0xff] %v154
    %s158 = scalar_lea.vmem [#allocation0], 88
    %v159 = vld [vmem:[%s158] sm:$0xff]
    %s160 = scalar_lea.vmem [#allocation2], 88
    %v161 = vld [vmem:[%s160] sm:$0xff]
    %162 = xla_tuple %v159, %v161
    %163 = xla_tuple %162
    %v164 = vmul.f32 %v159, %v161
    %165 = xla_tuple %v164
    %s166 = scalar_lea.vmem %s2, 88
    %167 = vst [vmem:[%s166] sm:$0xff] %v164
    %s168 = scalar_lea.vmem [#allocation0], 152
    %v169 = vld [vmem:[%s168] sm:$0xff]
    %s170 = scalar_lea.vmem [#allocation2], 152
    %v171 = vld [vmem:[%s170] sm:$0xff]
    %172 = xla_tuple %v169, %v171
    %173 = xla_tuple %172
    %v174 = vmul.f32 %v169, %v171
    %175 = xla_tuple %v174
    %s176 = scalar_lea.vmem %s2, 152
    %177 = vst [vmem:[%s176] sm:$0xff] %v174
    %s178 = scalar_lea.vmem [#allocation0], 216
    %v179 = vld [vmem:[%s178] sm:$0xff]
    %s180 = scalar_lea.vmem [#allocation2], 216
    %v181 = vld [vmem:[%s180] sm:$0xff]
    %182 = xla_tuple %v179, %v181
    %183 = xla_tuple %182
    %v184 = vmul.f32 %v179, %v181
    %185 = xla_tuple %v184
    %s186 = scalar_lea.vmem %s2, 216
    %187 = vst [vmem:[%s186] sm:$0xff] %v184
    %s188 = scalar_lea.vmem [#allocation0], 32
    %v189 = vld [vmem:[%s188] sm:$0xff]
    %s190 = scalar_lea.vmem [#allocation2], 32
    %v191 = vld [vmem:[%s190] sm:$0xff]
    %192 = xla_tuple %v189, %v191
    %193 = xla_tuple %192
    %v194 = vmul.f32 %v189, %v191
    %195 = xla_tuple %v194
    %s196 = scalar_lea.vmem %s2, 32
    %197 = vst [vmem:[%s196] sm:$0xff] %v194
    %s198 = scalar_lea.vmem [#allocation0], 96
    %v199 = vld [vmem:[%s198] sm:$0xff]
    %s200 = scalar_lea.vmem [#allocation2], 96
    %v201 = vld [vmem:[%s200] sm:$0xff]
    %202 = xla_tuple %v199, %v201
    %203 = xla_tuple %202
    %v204 = vmul.f32 %v199, %v201
    %205 = xla_tuple %v204
    %s206 = scalar_lea.vmem %s2, 96
    %207 = vst [vmem:[%s206] sm:$0xff] %v204
    %s208 = scalar_lea.vmem [#allocation0], 160
    %v209 = vld [vmem:[%s208] sm:$0xff]
    %s210 = scalar_lea.vmem [#allocation2], 160
    %v211 = vld [vmem:[%s210] sm:$0xff]
    %212 = xla_tuple %v209, %v211
    %213 = xla_tuple %212
    %v214 = vmul.f32 %v209, %v211
    %215 = xla_tuple %v214
    %s216 = scalar_lea.vmem %s2, 160
    %217 = vst [vmem:[%s216] sm:$0xff] %v214
    %s218 = scalar_lea.vmem [#allocation0], 224
    %v219 = vld [vmem:[%s218] sm:$0xff]
    %s220 = scalar_lea.vmem [#allocation2], 224
    %v221 = vld [vmem:[%s220] sm:$0xff]
    %222 = xla_tuple %v219, %v221
    %223 = xla_tuple %222
    %v224 = vmul.f32 %v219, %v221
    %225 = xla_tuple %v224
    %s226 = scalar_lea.vmem %s2, 224
    %227 = vst [vmem:[%s226] sm:$0xff] %v224
    %s228 = scalar_lea.vmem [#allocation0], 40
    %v229 = vld [vmem:[%s228] sm:$0xff]
    %s230 = scalar_lea.vmem [#allocation2], 40
    %v231 = vld [vmem:[%s230] sm:$0xff]
    %232 = xla_tuple %v229, %v231
    %233 = xla_tuple %232
    %v234 = vmul.f32 %v229, %v231
    %235 = xla_tuple %v234
    %s236 = scalar_lea.vmem %s2, 40
    %237 = vst [vmem:[%s236] sm:$0xff] %v234
    %s238 = scalar_lea.vmem [#allocation0], 104
    %v239 = vld [vmem:[%s238] sm:$0xff]
    %s240 = scalar_lea.vmem [#allocation2], 104
    %v241 = vld [vmem:[%s240] sm:$0xff]
    %242 = xla_tuple %v239, %v241
    %243 = xla_tuple %242
    %v244 = vmul.f32 %v239, %v241
    %245 = xla_tuple %v244
    %s246 = scalar_lea.vmem %s2, 104
    %247 = vst [vmem:[%s246] sm:$0xff] %v244
    %s248 = scalar_lea.vmem [#allocation0], 168
    %v249 = vld [vmem:[%s248] sm:$0xff]
    %s250 = scalar_lea.vmem [#allocation2], 168
    %v251 = vld [vmem:[%s250] sm:$0xff]
    %252 = xla_tuple %v249, %v251
    %253 = xla_tuple %252
    %v254 = vmul.f32 %v249, %v251
    %255 = xla_tuple %v254
    %s256 = scalar_lea.vmem %s2, 168
    %257 = vst [vmem:[%s256] sm:$0xff] %v254
    %s258 = scalar_lea.vmem [#allocation0], 232
    %v259 = vld [vmem:[%s258] sm:$0xff]
    %s260 = scalar_lea.vmem [#allocation2], 232
    %v261 = vld [vmem:[%s260] sm:$0xff]
    %262 = xla_tuple %v259, %v261
    %263 = xla_tuple %262
    %v264 = vmul.f32 %v259, %v261
    %265 = xla_tuple %v264
    %s266 = scalar_lea.vmem %s2, 232
    %267 = vst [vmem:[%s266] sm:$0xff] %v264
    %s268 = scalar_lea.vmem [#allocation0], 48
    %v269 = vld [vmem:[%s268] sm:$0xff]
    %s270 = scalar_lea.vmem [#allocation2], 48
    %v271 = vld [vmem:[%s270] sm:$0xff]
    %272 = xla_tuple %v269, %v271
    %273 = xla_tuple %272
    %v274 = vmul.f32 %v269, %v271
    %275 = xla_tuple %v274
    %s276 = scalar_lea.vmem %s2, 48
    %277 = vst [vmem:[%s276] sm:$0xff] %v274
    %s278 = scalar_lea.vmem [#allocation0], 112
    %v279 = vld [vmem:[%s278] sm:$0xff]
    %s280 = scalar_lea.vmem [#allocation2], 112
    %v281 = vld [vmem:[%s280] sm:$0xff]
    %282 = xla_tuple %v279, %v281
    %283 = xla_tuple %282
    %v284 = vmul.f32 %v279, %v281
    %285 = xla_tuple %v284
    %s286 = scalar_lea.vmem %s2, 112
    %287 = vst [vmem:[%s286] sm:$0xff] %v284
    %s288 = scalar_lea.vmem [#allocation0], 176
    %v289 = vld [vmem:[%s288] sm:$0xff]
    %s290 = scalar_lea.vmem [#allocation2], 176
    %v291 = vld [vmem:[%s290] sm:$0xff]
    %292 = xla_tuple %v289, %v291
    %293 = xla_tuple %292
    %v294 = vmul.f32 %v289, %v291
    %295 = xla_tuple %v294
    %s296 = scalar_lea.vmem %s2, 176
    %297 = vst [vmem:[%s296] sm:$0xff] %v294
    %s298 = scalar_lea.vmem [#allocation0], 240
    %v299 = vld [vmem:[%s298] sm:$0xff]
    %s300 = scalar_lea.vmem [#allocation2], 240
    %v301 = vld [vmem:[%s300] sm:$0xff]
    %302 = xla_tuple %v299, %v301
    %303 = xla_tuple %302
    %v304 = vmul.f32 %v299, %v301
    %305 = xla_tuple %v304
    %s306 = scalar_lea.vmem %s2, 240
    %307 = vst [vmem:[%s306] sm:$0xff] %v304
    %s308 = scalar_lea.vmem [#allocation0], 56
    %v309 = vld [vmem:[%s308] sm:$0xff]
    %s310 = scalar_lea.vmem [#allocation2], 56
    %v311 = vld [vmem:[%s310] sm:$0xff]
    %312 = xla_tuple %v309, %v311
    %313 = xla_tuple %312
    %v314 = vmul.f32 %v309, %v311
    %315 = xla_tuple %v314
    %s316 = scalar_lea.vmem %s2, 56
    %317 = vst [vmem:[%s316] sm:$0xff] %v314
    %s318 = scalar_lea.vmem [#allocation0], 120
    %v319 = vld [vmem:[%s318] sm:$0xff]
    %s320 = scalar_lea.vmem [#allocation2], 120
    %v321 = vld [vmem:[%s320] sm:$0xff]
    %322 = xla_tuple %v319, %v321
    %323 = xla_tuple %322
    %v324 = vmul.f32 %v319, %v321
    %325 = xla_tuple %v324
    %s326 = scalar_lea.vmem %s2, 120
    %327 = vst [vmem:[%s326] sm:$0xff] %v324
    %s328 = scalar_lea.vmem [#allocation0], 184
    %v329 = vld [vmem:[%s328] sm:$0xff]
    %s330 = scalar_lea.vmem [#allocation2], 184
    %v331 = vld [vmem:[%s330] sm:$0xff]
    %332 = xla_tuple %v329, %v331
    %333 = xla_tuple %332
    %v334 = vmul.f32 %v329, %v331
    %335 = xla_tuple %v334
    %s336 = scalar_lea.vmem %s2, 184
    %337 = vst [vmem:[%s336] sm:$0xff] %v334
    %s338 = scalar_lea.vmem [#allocation0], 248
    %v339 = vld [vmem:[%s338] sm:$0xff]
    %s340 = scalar_lea.vmem [#allocation2], 248
    %v341 = vld [vmem:[%s340] sm:$0xff]
    %342 = xla_tuple %v339, %v341
    %343 = xla_tuple %342
    %v344 = vmul.f32 %v339, %v341
    %345 = xla_tuple %v344
    %s346 = scalar_lea.vmem %s2, 248
    %347 = vst [vmem:[%s346] sm:$0xff] %v344
    %348 = vsyncpa [#allocation1], 1
    %349 = vsyncpa [#allocation3], 1

// kernel: mul.4
$region0: #{mul.4}
  #allocation0 [shape = 's32[1]{0}', space=sflag, size = 0x4, scoped, tag = 'scoped memory for mul.4']
  %s0 = inlined_call_operand.vmem [shape: f32[32,32], index: 0, kind: input, shape index: {}]
  %s1 = inlined_call_operand.vmem [shape: f32[32,32], index: 1, kind: input, shape index: {}]
  %s2 = inlined_call_operand.vmem [shape: f32[32,32], index: 2, kind: output, shape index: {}]
  %v3 = vld [vmem:[%s0] sm:$0xff]
  %v4 = vld [vmem:[%s1] sm:$0xff]
  %5 = xla_tuple %v3, %v4
  %6 = xla_tuple %5
  %v7 = vmul.f32 %v3, %v4
  %8 = xla_tuple %v7
  %9 = vst [vmem:[%s2] sm:$0xff] %v7
  %s10 = scalar_lea.vmem %s0, 8
  %v11 = vld [vmem:[%s10] sm:$0xff]
  %s12 = scalar_lea.vmem %s1, 8
  %v13 = vld [vmem:[%s12] sm:$0xff]
  %14 = xla_tuple %v11, %v13
  %15 = xla_tuple %14
  %v16 = vmul.f32 %v11, %v13
  %17 = xla_tuple %v16
  %s18 = scalar_lea.vmem %s2, 8
  %19 = vst [vmem:[%s18] sm:$0xff] %v16
  %s20 = scalar_lea.vmem %s0, 16
  %v21 = vld [vmem:[%s20] sm:$0xff]
  %s22 = scalar_lea.vmem %s1, 16
  %v23 = vld [vmem:[%s22] sm:$0xff]
  %24 = xla_tuple %v21, %v23
  %25 = xla_tuple %24
  %v26 = vmul.f32 %v21, %v23
  %27 = xla_tuple %v26
  %s28 = scalar_lea.vmem %s2, 16
  %29 = vst [vmem:[%s28] sm:$0xff] %v26
  %s30 = scalar_lea.vmem %s0, 24
  %v31 = vld [vmem:[%s30] sm:$0xff]
  %s32 = scalar_lea.vmem %s1, 24
  %v33 = vld [vmem:[%s32] sm:$0xff]
  %34 = xla_tuple %v31, %v33
  %35 = xla_tuple %34
  %v36 = vmul.f32 %v31, %v33
  %37 = xla_tuple %v36
  %s38 = scalar_lea.vmem %s2, 24
  %39 = vst [vmem:[%s38] sm:$0xff] %v36

// kernel: sparse_model_forward.1
$region0: #{sparse_model_forward.1}
  #allocation0 [shape = 'u32[]', space=smem, size = 0x4, offset = 0x4, fixed_abs, tag = 'smem constant byte address 0x4 - core index']
  #allocation1 [shape = 'u32[72,128]{1,0:T(1,128)}', space=vmem, size = 0x9000, scoped, tag = 'internal scratch']
  %s0 = inlined_call_operand.vmem [shape: f32[8,1024], index: 0, kind: input, shape index: {}]
  %s1 = inlined_call_operand.vmem [shape: f32[1024,32], index: 1, kind: input, shape index: {}]
  %s2 = inlined_call_operand.vmem [shape: f32[1,32], index: 2, kind: input, shape index: {}]
  %s3 = inlined_call_operand.vmem [shape: f32[32,32], index: 3, kind: input, shape index: {}]
  %s4 = inlined_call_operand.vmem [shape: f32[1,32], index: 4, kind: input, shape index: {}]
  %s5 = inlined_call_operand.vmem [shape: f32[32,32], index: 5, kind: input, shape index: {}]
  %s6 = inlined_call_operand.vmem [shape: f32[1,32], index: 6, kind: input, shape index: {}]
  %s7 = inlined_call_operand.hbm [shape: f32[8,32], index: 7, kind: output, shape index: {}]
  %s8 = sld [smem:[#allocation0]]
  $region38: #{sparse_model_forward.1} parent=0
    _
  %s10 = ssub.s32 1, %s8
  %s11 = scalar_select 0, %s10, %s8
  $region1: #{sparse_model_forward.1} parent=0
    #allocation2 [shape = 'u8[4096]{0}', space=vmem, size = 0x1000, scoped, tag = 'output window, operand 0, single buffered']
    #allocation3 [shape = 's32[1]{0}', space=sflag, size = 0x4, scoped, tag = 'scoped memory for sparse_model_forward.1']
    %12 = vsyncpa [#allocation3], 0
    // Predicated region
    $region2: #{sparse_model_forward.1} parent=1 // pred_check
      _
    $region3: #{sparse_model_forward.1} parent=1 // pred_check_branch
      %14 = sbr.rel (0) target = $region5
    $region4: #{sparse_model_forward.1} parent=1 // pred_region
      _
    $region5: #{sparse_model_forward.1} parent=1 // pred_fallthru
      _
    // Predicated region
    $region6: #{sparse_model_forward.1} parent=1 // pred_check
      _
    $region7: #{sparse_model_forward.1} parent=1 // pred_check_branch
      %16 = sbr.rel (0) target = $region9
    $region8: #{sparse_model_forward.1} parent=1 // pred_region
      _
    $region9: #{sparse_model_forward.1} parent=1 // pred_fallthru
      _
    // Predicated region
    $region10: #{sparse_model_forward.1} parent=1 // pred_check
      _
    $region11: #{sparse_model_forward.1} parent=1 // pred_check_branch
      %18 = sbr.rel (0) target = $region13
    $region12: #{sparse_model_forward.1} parent=1 // pred_region
      _
    $region13: #{sparse_model_forward.1} parent=1 // pred_fallthru
      _
    // Predicated region
    $region14: #{sparse_model_forward.1} parent=1 // pred_check
      _
    $region15: #{sparse_model_forward.1} parent=1 // pred_check_branch
      %20 = sbr.rel (0) target = $region17
    $region16: #{sparse_model_forward.1} parent=1 // pred_region
      _
    $region17: #{sparse_model_forward.1} parent=1 // pred_fallthru
      _
    // Predicated region
    $region18: #{sparse_model_forward.1} parent=1 // pred_check
      _
    $region19: #{sparse_model_forward.1} parent=1 // pred_check_branch
      %22 = sbr.rel (0) target = $region21
    $region20: #{sparse_model_forward.1} parent=1 // pred_region
      _
    $region21: #{sparse_model_forward.1} parent=1 // pred_fallthru
      _
    // Predicated region
    $region22: #{sparse_model_forward.1} parent=1 // pred_check
      _
    $region23: #{sparse_model_forward.1} parent=1 // pred_check_branch
      %24 = sbr.rel (0) target = $region25
    $region24: #{sparse_model_forward.1} parent=1 // pred_region
      _
    $region25: #{sparse_model_forward.1} parent=1 // pred_fallthru
      _
    // Predicated region
    $region26: #{sparse_model_forward.1} parent=1 // pred_check
      _
    $region27: #{sparse_model_forward.1} parent=1 // pred_check_branch
      %26 = sbr.rel (0) target = $region29
    $region28: #{sparse_model_forward.1} parent=1 // pred_region
      _
    $region29: #{sparse_model_forward.1} parent=1 // pred_fallthru
      _
    %v27 = vld [vmem:[%s0] sm:$0xff]
    %v28 = vld [vmem:[%s0 + $0x8] sm:$0xff]
    %v29 = vld [vmem:[%s0 + $0x10] sm:$0xff]
    %v30 = vld [vmem:[%s0 + $0x18] sm:$0xff]
    %v31 = vld [vmem:[%s0 + $0x20] sm:$0xff]
    %v32 = vld [vmem:[%s0 + $0x28] sm:$0xff]
    %v33 = vld [vmem:[%s0 + $0x30] sm:$0xff]
    %v34 = vld [vmem:[%s0 + $0x38] sm:$0xff]
    %v35 = vld [vmem:[%s1] sm:$0xff]
    %v36 = vld [vmem:[%s1 + $0x8] sm:$0xff]
    %v37 = vld [vmem:[%s1 + $0x10] sm:$0xff]
    %v38 = vld [vmem:[%s1 + $0x18] sm:$0xff]
    %v39 = vld [vmem:[%s1 + $0x20] sm:$0xff]
    %v40 = vld [vmem:[%s1 + $0x28] sm:$0xff]
    %v41 = vld [vmem:[%s1 + $0x30] sm:$0xff]
    %v42 = vld [vmem:[%s1 + $0x38] sm:$0xff]
    %v43 = vld [vmem:[%s1 + $0x40] sm:$0xff]
    %v44 = vld [vmem:[%s1 + $0x48] sm:$0xff]
    %v45 = vld [vmem:[%s1 + $0x50] sm:$0xff]
    %v46 = vld [vmem:[%s1 + $0x58] sm:$0xff]
    %v47 = vld [vmem:[%s1 + $0x60] sm:$0xff]
    %v48 = vld [vmem:[%s1 + $0x68] sm:$0xff]
    %v49 = vld [vmem:[%s1 + $0x70] sm:$0xff]
    %v50 = vld [vmem:[%s1 + $0x78] sm:$0xff]
    %v51 = vld [vmem:[%s1 + $0x80] sm:$0xff]
    %v52 = vld [vmem:[%s1 + $0x88] sm:$0xff]
    %v53 = vld [vmem:[%s1 + $0x90] sm:$0xff]
    %v54 = vld [vmem:[%s1 + $0x98] sm:$0xff]
    %v55 = vld [vmem:[%s1 + $0xa0] sm:$0xff]
    %v56 = vld [vmem:[%s1 + $0xa8] sm:$0xff]
    %v57 = vld [vmem:[%s1 + $0xb0] sm:$0xff]
    %v58 = vld [vmem:[%s1 + $0xb8] sm:$0xff]
    %v59 = vld [vmem:[%s1 + $0xc0] sm:$0xff]
    %v60 = vld [vmem:[%s1 + $0xc8] sm:$0xff]
    %v61 = vld [vmem:[%s1 + $0xd0] sm:$0xff]
    %v62 = vld [vmem:[%s1 + $0xd8] sm:$0xff]
    %v63 = vld [vmem:[%s1 + $0xe0] sm:$0xff]
    %v64 = vld [vmem:[%s1 + $0xe8] sm:$0xff]
    %v65 = vld [vmem:[%s1 + $0xf0] sm:$0xff]
    %v66 = vld [vmem:[%s1 + $0xf8] sm:$0xff]
    %v67 = vld [vmem:[%s1 + $0x100] sm:$0xff]
    %v68 = vld [vmem:[%s1 + $0x108] sm:$0xff]
    %v69 = vld [vmem:[%s1 + $0x110] sm:$0xff]
    %v70 = vld [vmem:[%s1 + $0x118] sm:$0xff]
    %v71 = vld [vmem:[%s1 + $0x120] sm:$0xff]
    %v72 = vld [vmem:[%s1 + $0x128] sm:$0xff]
    %v73 = vld [vmem:[%s1 + $0x130] sm:$0xff]
    %v74 = vld [vmem:[%s1 + $0x138] sm:$0xff]
    %v75 = vld [vmem:[%s1 + $0x140] sm:$0xff]
    %v76 = vld [vmem:[%s1 + $0x148] sm:$0xff]
    %v77 = vld [vmem:[%s1 + $0x150] sm:$0xff]
    %v78 = vld [vmem:[%s1 + $0x158] sm:$0xff]
    %v79 = vld [vmem:[%s1 + $0x160] sm:$0xff]
    %v80 = vld [vmem:[%s1 + $0x168] sm:$0xff]
    %v81 = vld [vmem:[%s1 + $0x170] sm:$0xff]
    %v82 = vld [vmem:[%s1 + $0x178] sm:$0xff]
    %v83 = vld [vmem:[%s1 + $0x180] sm:$0xff]
    %v84 = vld [vmem:[%s1 + $0x188] sm:$0xff]
    %v85 = vld [vmem:[%s1 + $0x190] sm:$0xff]
    %v86 = vld [vmem:[%s1 + $0x198] sm:$0xff]
    %v87 = vld [vmem:[%s1 + $0x1a0] sm:$0xff]
    %v88 = vld [vmem:[%s1 + $0x1a8] sm:$0xff]
    %v89 = vld [vmem:[%s1 + $0x1b0] sm:$0xff]
    %v90 = vld [vmem:[%s1 + $0x1b8] sm:$0xff]
    %v91 = vld [vmem:[%s1 + $0x1c0] sm:$0xff]
    %v92 = vld [vmem:[%s1 + $0x1c8] sm:$0xff]
    %v93 = vld [vmem:[%s1 + $0x1d0] sm:$0xff]
    %v94 = vld [vmem:[%s1 + $0x1d8] sm:$0xff]
    %v95 = vld [vmem:[%s1 + $0x1e0] sm:$0xff]
    %v96 = vld [vmem:[%s1 + $0x1e8] sm:$0xff]
    %v97 = vld [vmem:[%s1 + $0x1f0] sm:$0xff]
    %v98 = vld [vmem:[%s1 + $0x1f8] sm:$0xff]
    %v99 = vld [vmem:[%s1 + $0x200] sm:$0xff]
    %v100 = vld [vmem:[%s1 + $0x208] sm:$0xff]
    %v101 = vld [vmem:[%s1 + $0x210] sm:$0xff]
    %v102 = vld [vmem:[%s1 + $0x218] sm:$0xff]
    %v103 = vld [vmem:[%s1 + $0x220] sm:$0xff]
    %v104 = vld [vmem:[%s1 + $0x228] sm:$0xff]
    %v105 = vld [vmem:[%s1 + $0x230] sm:$0xff]
    %v106 = vld [vmem:[%s1 + $0x238] sm:$0xff]
    %v107 = vld [vmem:[%s1 + $0x240] sm:$0xff]
    %v108 = vld [vmem:[%s1 + $0x248] sm:$0xff]
    %v109 = vld [vmem:[%s1 + $0x250] sm:$0xff]
    %v110 = vld [vmem:[%s1 + $0x258] sm:$0xff]
    %v111 = vld [vmem:[%s1 + $0x260] sm:$0xff]
    %v112 = vld [vmem:[%s1 + $0x268] sm:$0xff]
    %v113 = vld [vmem:[%s1 + $0x270] sm:$0xff]
    %v114 = vld [vmem:[%s1 + $0x278] sm:$0xff]
    %v115 = vld [vmem:[%s1 + $0x280] sm:$0xff]
    %v116 = vld [vmem:[%s1 + $0x288] sm:$0xff]
    %v117 = vld [vmem:[%s1 + $0x290] sm:$0xff]
    %v118 = vld [vmem:[%s1 + $0x298] sm:$0xff]
    %v119 = vld [vmem:[%s1 + $0x2a0] sm:$0xff]
    %v120 = vld [vmem:[%s1 + $0x2a8] sm:$0xff]
    %v121 = vld [vmem:[%s1 + $0x2b0] sm:$0xff]
    %v122 = vld [vmem:[%s1 + $0x2b8] sm:$0xff]
    %v123 = vld [vmem:[%s1 + $0x2c0] sm:$0xff]
    %v124 = vld [vmem:[%s1 + $0x2c8] sm:$0xff]
    %v125 = vld [vmem:[%s1 + $0x2d0] sm:$0xff]
    %v126 = vld [vmem:[%s1 + $0x2d8] sm:$0xff]
    %v127 = vld [vmem:[%s1 + $0x2e0] sm:$0xff]
    %v128 = vld [vmem:[%s1 + $0x2e8] sm:$0xff]
    %v129 = vld [vmem:[%s1 + $0x2f0] sm:$0xff]
    %v130 = vld [vmem:[%s1 + $0x2f8] sm:$0xff]
    %v131 = vld [vmem:[%s1 + $0x300] sm:$0xff]
    %v132 = vld [vmem:[%s1 + $0x308] sm:$0xff]
    %v133 = vld [vmem:[%s1 + $0x310] sm:$0xff]
    %v134 = vld [vmem:[%s1 + $0x318] sm:$0xff]
    %v135 = vld [vmem:[%s1 + $0x320] sm:$0xff]
    %v136 = vld [vmem:[%s1 + $0x328] sm:$0xff]
    %v137 = vld [vmem:[%s1 + $0x330] sm:$0xff]
    %v138 = vld [vmem:[%s1 + $0x338] sm:$0xff]
    %v139 = vld [vmem:[%s1 + $0x340] sm:$0xff]
    %v140 = vld [vmem:[%s1 + $0x348] sm:$0xff]
    %v141 = vld [vmem:[%s1 + $0x350] sm:$0xff]
    %v142 = vld [vmem:[%s1 + $0x358] sm:$0xff]
    %v143 = vld [vmem:[%s1 + $0x360] sm:$0xff]
    %v144 = vld [vmem:[%s1 + $0x368] sm:$0xff]
    %v145 = vld [vmem:[%s1 + $0x370] sm:$0xff]
    %v146 = vld [vmem:[%s1 + $0x378] sm:$0xff]
    %v147 = vld [vmem:[%s1 + $0x380] sm:$0xff]
    %v148 = vld [vmem:[%s1 + $0x388] sm:$0xff]
    %v149 = vld [vmem:[%s1 + $0x390] sm:$0xff]
    %v150 = vld [vmem:[%s1 + $0x398] sm:$0xff]
    %v151 = vld [vmem:[%s1 + $0x3a0] sm:$0xff]
    %v152 = vld [vmem:[%s1 + $0x3a8] sm:$0xff]
    %v153 = vld [vmem:[%s1 + $0x3b0] sm:$0xff]
    %v154 = vld [vmem:[%s1 + $0x3b8] sm:$0xff]
    %v155 = vld [vmem:[%s1 + $0x3c0] sm:$0xff]
    %v156 = vld [vmem:[%s1 + $0x3c8] sm:$0xff]
    %v157 = vld [vmem:[%s1 + $0x3d0] sm:$0xff]
    %v158 = vld [vmem:[%s1 + $0x3d8] sm:$0xff]
    %v159 = vld [vmem:[%s1 + $0x3e0] sm:$0xff]
    %v160 = vld [vmem:[%s1 + $0x3e8] sm:$0xff]
    %v161 = vld [vmem:[%s1 + $0x3f0] sm:$0xff]
    %v162 = vld [vmem:[%s1 + $0x3f8] sm:$0xff]
    %v163 = vld [vmem:[%s2] sm:$0x1]
    %v165 = vperm.slane %v163, 0
    %167 = vmatpush.msra.mxu0 %v50
    %168 = vmatpush.msra.mxu0 %v49
    %169 = vmatpush.msra.mxu0 %v48
    %170 = vmatpush.msra.mxu0 %v47
    %171 = vmatpush.msra.mxu0 %v46
    %172 = vmatpush.msra.mxu0 %v45
    %173 = vmatpush.msra.mxu0 %v44
    %174 = vmatpush.msra.mxu0 %v43
    %175 = vmatpush.msra.mxu0 %v42
    %176 = vmatpush.msra.mxu0 %v41
    %177 = vmatpush.msra.mxu0 %v40
    %178 = vmatpush.msra.mxu0 %v39
    %179 = vmatpush.msra.mxu0 %v38
    %180 = vmatpush.msra.mxu0 %v37
    %181 = vmatpush.msra.mxu0 %v36
    %182 = vmatpush.msra.mxu0 %v35
    %183 = vmatmul.f32.gmra.mxu0 %v27
    %v184 = vpop.f32.mrf.mxu0
    %v185 = vadd.f32 %v165, %v184
    %186 = vdwg.mxu0
    %187 = vmatpush.msra.mxu0 %v66
    %188 = vmatpush.msra.mxu0 %v65
    %189 = vmatpush.msra.mxu0 %v64
    %190 = vmatpush.msra.mxu0 %v63
    %191 = vmatpush.msra.mxu0 %v62
    %192 = vmatpush.msra.mxu0 %v61
    %193 = vmatpush.msra.mxu0 %v60
    %194 = vmatpush.msra.mxu0 %v59
    %195 = vmatpush.msra.mxu0 %v58
    %196 = vmatpush.msra.mxu0 %v57
    %197 = vmatpush.msra.mxu0 %v56
    %198 = vmatpush.msra.mxu0 %v55
    %199 = vmatpush.msra.mxu0 %v54
    %200 = vmatpush.msra.mxu0 %v53
    %201 = vmatpush.msra.mxu0 %v52
    %202 = vmatpush.msra.mxu0 %v51
    %203 = vmatmul.f32.gmra.mxu0 %v28
    %v204 = vpop.f32.mrf.mxu0
    %v205 = vadd.f32 %v185, %v204
    %206 = vdwg.mxu0
    %207 = vmatpush.msra.mxu0 %v82
    %208 = vmatpush.msra.mxu0 %v81
    %209 = vmatpush.msra.mxu0 %v80
    %210 = vmatpush.msra.mxu0 %v79
    %211 = vmatpush.msra.mxu0 %v78
    %212 = vmatpush.msra.mxu0 %v77
    %213 = vmatpush.msra.mxu0 %v76
    %214 = vmatpush.msra.mxu0 %v75
    %215 = vmatpush.msra.mxu0 %v74
    %216 = vmatpush.msra.mxu0 %v73
    %217 = vmatpush.msra.mxu0 %v72
    %218 = vmatpush.msra.mxu0 %v71
    %219 = vmatpush.msra.mxu0 %v70
    %220 = vmatpush.msra.mxu0 %v69
    %221 = vmatpush.msra.mxu0 %v68
    %222 = vmatpush.msra.mxu0 %v67
    %223 = vmatmul.f32.gmra.mxu0 %v29
    %v224 = vpop.f32.mrf.mxu0
    %v225 = vadd.f32 %v205, %v224
    %226 = vdwg.mxu0
    %227 = vmatpush.msra.mxu0 %v98
    %228 = vmatpush.msra.mxu0 %v97
    %229 = vmatpush.msra.mxu0 %v96
    %230 = vmatpush.msra.mxu0 %v95
    %231 = vmatpush.msra.mxu0 %v94
    %232 = vmatpush.msra.mxu0 %v93
    %233 = vmatpush.msra.mxu0 %v92
    %234 = vmatpush.msra.mxu0 %v91
    %235 = vmatpush.msra.mxu0 %v90
    %236 = vmatpush.msra.mxu0 %v89
    %237 = vmatpush.msra.mxu0 %v88
    %238 = vmatpush.msra.mxu0 %v87
    %239 = vmatpush.msra.mxu0 %v86
    %240 = vmatpush.msra.mxu0 %v85
    %241 = vmatpush.msra.mxu0 %v84
    %242 = vmatpush.msra.mxu0 %v83
    %243 = vmatmul.f32.gmra.mxu0 %v30
    %v244 = vpop.f32.mrf.mxu0
    %v245 = vadd.f32 %v225, %v244
    %246 = vdwg.mxu0
    %247 = vmatpush.msra.mxu0 %v114
    %248 = vmatpush.msra.mxu0 %v113
    %249 = vmatpush.msra.mxu0 %v112
    %250 = vmatpush.msra.mxu0 %v111
    %251 = vmatpush.msra.mxu0 %v110
    %252 = vmatpush.msra.mxu0 %v109
    %253 = vmatpush.msra.mxu0 %v108
    %254 = vmatpush.msra.mxu0 %v107
    %255 = vmatpush.msra.mxu0 %v106
    %256 = vmatpush.msra.mxu0 %v105
    %257 = vmatpush.msra.mxu0 %v104
    %258 = vmatpush.msra.mxu0 %v103
    %259 = vmatpush.msra.mxu0 %v102
    %260 = vmatpush.msra.mxu0 %v101
    %261 = vmatpush.msra.mxu0 %v100
    %262 = vmatpush.msra.mxu0 %v99
    %263 = vmatmul.f32.gmra.mxu0 %v31
    %v264 = vpop.f32.mrf.mxu0
    %v265 = vadd.f32 %v245, %v264
    %266 = vdwg.mxu0
    %267 = vmatpush.msra.mxu0 %v130
    %268 = vmatpush.msra.mxu0 %v129
    %269 = vmatpush.msra.mxu0 %v128
    %270 = vmatpush.msra.mxu0 %v127
    %271 = vmatpush.msra.mxu0 %v126
    %272 = vmatpush.msra.mxu0 %v125
    %273 = vmatpush.msra.mxu0 %v124
    %274 = vmatpush.msra.mxu0 %v123
    %275 = vmatpush.msra.mxu0 %v122
    %276 = vmatpush.msra.mxu0 %v121
    %277 = vmatpush.msra.mxu0 %v120
    %278 = vmatpush.msra.mxu0 %v119
    %279 = vmatpush.msra.mxu0 %v118
    %280 = vmatpush.msra.mxu0 %v117
    %281 = vmatpush.msra.mxu0 %v116
    %282 = vmatpush.msra.mxu0 %v115
    %283 = vmatmul.f32.gmra.mxu0 %v32
    %v284 = vpop.f32.mrf.mxu0
    %v285 = vadd.f32 %v265, %v284
    %286 = vdwg.mxu0
    %287 = vmatpush.msra.mxu0 %v146
    %288 = vmatpush.msra.mxu0 %v145
    %289 = vmatpush.msra.mxu0 %v144
    %290 = vmatpush.msra.mxu0 %v143
    %291 = vmatpush.msra.mxu0 %v142
    %292 = vmatpush.msra.mxu0 %v141
    %293 = vmatpush.msra.mxu0 %v140
    %294 = vmatpush.msra.mxu0 %v139
    %295 = vmatpush.msra.mxu0 %v138
    %296 = vmatpush.msra.mxu0 %v137
    %297 = vmatpush.msra.mxu0 %v136
    %298 = vmatpush.msra.mxu0 %v135
    %299 = vmatpush.msra.mxu0 %v134
    %300 = vmatpush.msra.mxu0 %v133
    %301 = vmatpush.msra.mxu0 %v132
    %302 = vmatpush.msra.mxu0 %v131
    %303 = vmatmul.f32.gmra.mxu0 %v33
    %v304 = vpop.f32.mrf.mxu0
    %v305 = vadd.f32 %v285, %v304
    %306 = vdwg.mxu0
    %307 = vmatpush.msra.mxu0 %v162
    %308 = vmatpush.msra.mxu0 %v161
    %309 = vmatpush.msra.mxu0 %v160
    %310 = vmatpush.msra.mxu0 %v159
    %311 = vmatpush.msra.mxu0 %v158
    %312 = vmatpush.msra.mxu0 %v157
    %313 = vmatpush.msra.mxu0 %v156
    %314 = vmatpush.msra.mxu0 %v155
    %315 = vmatpush.msra.mxu0 %v154
    %316 = vmatpush.msra.mxu0 %v153
    %317 = vmatpush.msra.mxu0 %v152
    %318 = vmatpush.msra.mxu0 %v151
    %319 = vmatpush.msra.mxu0 %v150
    %320 = vmatpush.msra.mxu0 %v149
    %321 = vmatpush.msra.mxu0 %v148
    %322 = vmatpush.msra.mxu0 %v147
    %323 = vmatmul.f32.gmra.mxu0 %v34
    %v324 = vpop.f32.mrf.mxu0
    %v325 = vadd.f32 %v305, %v324
    %326 = vdwg.mxu0
    %v327 = vld [vmem:[%s3] sm:$0xff]
    %v328 = vld [vmem:[%s3 + $0x8] sm:$0xff]
    %v329 = vld [vmem:[%s3 + $0x10] sm:$0xff]
    %v330 = vld [vmem:[%s3 + $0x18] sm:$0xff]
    %v331 = vld [vmem:[%s4] sm:$0x1]
    %v333 = vperm.slane %v331, 0
    %vm335 = vcmask 261120
    %v337 = vsel %vm335, %v325, 0
    %339 = vmatpush.msra.mxu0 0.0
    %340 = vmatpush.msra.mxu0 0.0
    %341 = vmatpush.msra.mxu0 0.0
    %342 = vmatpush.msra.mxu0 0.0
    %343 = vmatpush.msra.mxu0 0.0
    %344 = vmatpush.msra.mxu0 0.0
    %345 = vmatpush.msra.mxu0 0.0
    %346 = vmatpush.msra.mxu0 0.0
    %347 = vmatpush.msra.mxu0 0.0
    %348 = vmatpush.msra.mxu0 0.0
    %349 = vmatpush.msra.mxu0 0.0
    %350 = vmatpush.msra.mxu0 0.0
    %351 = vmatpush.msra.mxu0 %v330
    %352 = vmatpush.msra.mxu0 %v329
    %353 = vmatpush.msra.mxu0 %v328
    %354 = vmatpush.msra.mxu0 %v327
    %355 = vmatmul.f32.gmra.mxu0 %v337
    %v356 = vpop.f32.mrf.mxu0
    %v357 = vadd.f32 %v333, %v356
    %358 = vdwg.mxu0
    %v359 = vld [vmem:[%s5] sm:$0xff]
    %v360 = vld [vmem:[%s5 + $0x8] sm:$0xff]
    %v361 = vld [vmem:[%s5 + $0x10] sm:$0xff]
    %v362 = vld [vmem:[%s5 + $0x18] sm:$0xff]
    %v363 = vld [vmem:[%s6] sm:$0x1]
    %v365 = vperm.slane %v363, 0
    %v368 = vsel %vm335, %v357, 0
    %370 = vmatpush.msra.mxu0 0.0
    %371 = vmatpush.msra.mxu0 0.0
    %372 = vmatpush.msra.mxu0 0.0
    %373 = vmatpush.msra.mxu0 0.0
    %374 = vmatpush.msra.mxu0 0.0
    %375 = vmatpush.msra.mxu0 0.0
    %376 = vmatpush.msra.mxu0 0.0
    %377 = vmatpush.msra.mxu0 0.0
    %378 = vmatpush.msra.mxu0 0.0
    %379 = vmatpush.msra.mxu0 0.0
    %380 = vmatpush.msra.mxu0 0.0
    %381 = vmatpush.msra.mxu0 0.0
    %382 = vmatpush.msra.mxu0 %v362
    %383 = vmatpush.msra.mxu0 %v361
    %384 = vmatpush.msra.mxu0 %v360
    %385 = vmatpush.msra.mxu0 %v359
    %386 = vmatmul.f32.gmra.mxu0 %v368
    %v387 = vpop.f32.mrf.mxu0
    %v388 = vadd.f32 %v365, %v387
    %389 = vdwg.mxu0
    %v391 = vsel %vm335, %v388, 0
    %393 = vmatpush.msra.mxu0 0.0
    %394 = vmatpush.msra.mxu0 0.0
    %395 = vmatpush.msra.mxu0 0.0
    %396 = vmatpush.msra.mxu0 0.0
    %397 = vmatpush.msra.mxu0 0.0
    %398 = vmatpush.msra.mxu0 0.0
    %399 = vmatpush.msra.mxu0 0.0
    %400 = vmatpush.msra.mxu0 0.0
    %401 = vmatpush.msra.mxu0 0.0
    %402 = vmatpush.msra.mxu0 0.0
    %403 = vmatpush.msra.mxu0 0.0
    %404 = vmatpush.msra.mxu0 0.0
    %405 = vmatpush.msra.mxu0 %v362
    %406 = vmatpush.msra.mxu0 %v361
    %407 = vmatpush.msra.mxu0 %v360
    %408 = vmatpush.msra.mxu0 %v359
    %409 = vmatmul.f32.gmra.mxu0 %v391
    %v410 = vpop.f32.mrf.mxu0
    %v411 = vadd.f32 %v365, %v410
    %412 = vdwg.mxu0
    %413 = vst.msk [vmem:[#allocation2] sm:$0xff] %vm335, %v411
    // Predicated region
    $region30: #{sparse_model_forward.1} parent=1 // pred_check
      _
    $region31: #{sparse_model_forward.1} parent=1 // pred_check_branch
      %415 = sbr.rel (0) target = $region33
    $region32: #{sparse_model_forward.1} parent=1 // pred_region
      %417 = vsyncadd [#allocation3], 0
      %s419 = sshll.u32 [#allocation2], 4
      %s420 = int_to_ptr.vmem [resolvable:$true] %s419
      %s421 = sshll.u32 %s7, 4
      %s422 = int_to_ptr.hbm [resolvable:$true] %s421
      %424 = dma.vmem_to_hbm [thread:$0]  %s420, 128, %s422, [#allocation3]
    $region33: #{sparse_model_forward.1} parent=1 // pred_fallthru
      _
    // Predicated region
    $region34: #{sparse_model_forward.1} parent=1 // pred_check
      _
    $region35: #{sparse_model_forward.1} parent=1 // pred_check_branch
      %426 = sbr.rel (0) target = $region37
    $region36: #{sparse_model_forward.1} parent=1 // pred_region
      %428 = dma.done [#allocation3], 128
    $region37: #{sparse_model_forward.1} parent=1 // pred_fallthru
      _
    %429 = vsyncpa [#allocation3], 1

</llo_original>
